<compile_context>
chip_gen: v6e
topology: v6e:2x2x1
jax: 0.10.0
libtpu: 0.0.40
codegen_flags: <defaults>
</compile_context>

<pallas_src>
import functools

import jax
import jax.numpy as jnp
from jax.experimental import pallas as pl
from jax.experimental.pallas import tpu as pltpu

LANE = 128
SUBLANE = 8


def _round_up(x, m):
    return ((x + m - 1) // m) * m


@functools.lru_cache(maxsize=None)
def _chip_config():
    """Generation-aware block sizes (f32 rows of 128 lanes) and VMEM budget."""
    kind = ""
    try:
        kind = jax.devices()[0].device_kind.lower()
    except Exception:
        pass
    if "v7" in kind:
        # 64 MiB physical / 32 MiB scoped VMEM per TC, 2 TensorCores per chip.
        # none: 3 arrays x 2 bufs x 4 MiB = 24 MiB; sum: 2 x 2 x 4 MiB = 16 MiB.
        return dict(none_rows=8192, sum_rows=8192, num_tc=2, vmem_limit=40 << 20)
    if "v6" in kind:
        # none: 24 MiB; sum: 2 x 2 x 8 MiB = 32 MiB (128 MiB physical VMEM).
        return dict(none_rows=8192, sum_rows=16384, num_tc=1, vmem_limit=48 << 20)
    if "v5" in kind:
        # v5e scoped default is 16 MiB; keep 'none' at 12 MiB, raise the limit
        # so the 16 MiB sum path fits with headroom.
        return dict(none_rows=4096, sum_rows=8192, num_tc=1, vmem_limit=24 << 20)
    # Unknown generation: conservative defaults that fit every known budget.
    return dict(none_rows=4096, sum_rows=8192, num_tc=1, vmem_limit=24 << 20)


def _hinge_elementwise_kernel(yp_ref, yt_ref, out_ref):
    # Stream native dtype from HBM; upcast to f32 on the VPU (needed on v5e,
    # harmless elsewhere), write back in the output's native dtype.
    yp = yp_ref[...].astype(jnp.float32)
    yt = yt_ref[...].astype(jnp.float32)
    out_ref[...] = jnp.maximum(1.0 - yt * yp, 0.0).astype(out_ref.dtype)


def _hinge_sum_kernel(yp_ref, yt_ref, out_ref, *, rows, tile_rows, tiles_per_core):
    c = pl.program_id(0)  # TensorCore slot ("parallel")
    i = pl.program_id(1)  # reduction step ("arbitrary")

    @pl.when(i == 0)
    def _():
        out_ref[...] = jnp.zeros_like(out_ref)

    yp = yp_ref[...].astype(jnp.float32)
    yt = yt_ref[...].astype(jnp.float32)
    loss = jnp.maximum(1.0 - yt * yp, 0.0)

    # Only the (at most one per core) block that crosses the valid-row bound
    # pays for the tail mask.  Block-local row compare -> no int32 overflow
    # even for multi-billion element inputs.
    start_row = (c * tiles_per_core + i) * tile_rows
    straddles = start_row + tile_rows > rows

    @pl.when(jnp.logical_not(straddles))
    def _():
        # (tile_rows,128) -> (tile_rows/8, 8, 128) is layout-preserving; the
        # axis-0 sum is pure VPU vreg adds (no XLU in the steady state).
        out_ref[...] += loss.reshape(-1, SUBLANE, LANE).sum(axis=0)

    @pl.when(straddles)
    def _():
        r = jax.lax.broadcasted_iota(jnp.int32, loss.shape, 0)
        # Select (not multiply): neutralizes NaN/Inf in unspecified OOB rows.
        masked = jnp.where(r < rows - start_row, loss, 0.0)
        out_ref[...] += masked.reshape(-1, SUBLANE, LANE).sum(axis=0)


def hinge_loss(y_pred, y_true, reduction="none", *, block_rows=None):
    """JAX/Pallas equivalent of HingeLoss.forward."""
    assert y_pred.shape == y_true.shape, "shape mismatch"
    cfg = _chip_config()
    out_dtype = jnp.result_type(y_pred.dtype, y_true.dtype)

    yp = jnp.ravel(y_pred)
    yt = jnp.ravel(y_true)
    n = yp.shape[0]

    # 128-aligned prefix goes through the kernel (identity slice when n % 128
    # == 0); the <=127-element ragged tail is handled in plain JAX -- no full
    # array pad copies.
    n_main = (n // LANE) * LANE
    rows = n_main // LANE

    tail_loss = None
    if n_main != n:
        tp = yp[n_main:].astype(jnp.float32)
        tt = yt[n_main:].astype(jnp.float32)
        tail_loss = jnp.maximum(1.0 - tt * tp, 0.0)

    if reduction in ("mean", "sum"):
        total = jnp.float32(0.0)
        if rows > 0:
            br = block_rows if block_rows is not None else cfg["sum_rows"]
            tile_rows = _round_up(min(br, rows), SUBLANE)
            total_tiles = pl.cdiv(rows, tile_rows)
            num_tc = cfg["num_tc"]
            cores_used = num_tc if (num_tc > 1 and total_tiles % num_tc == 0) else 1
            tiles_per_core = total_tiles // cores_used

            yp2 = yp[:n_main].reshape(rows, LANE)
            yt2 = yt[:n_main].reshape(rows, LANE)

            def in_map(c, i):
                return (c * tiles_per_core + i, 0)

            partials = pl.pallas_call(
                functools.partial(
                    _hinge_sum_kernel,
                    rows=rows,
                    tile_rows=tile_rows,
                    tiles_per_core=tiles_per_core,
                ),
                out_shape=jax.ShapeDtypeStruct(
                    (cores_used, SUBLANE, LANE), jnp.float32),
                grid_spec=pltpu.PrefetchScalarGridSpec(
                    num_scalar_prefetch=0,
                    grid=(cores_used, tiles_per_core),
                    in_specs=[
                        pl.BlockSpec((tile_rows, LANE), in_map),
                        pl.BlockSpec((tile_rows, LANE), in_map),
                    ],
                    # Per-core resident (8,128) partial-sum accumulator.
                    out_specs=pl.BlockSpec(
                        (None, SUBLANE, LANE), lambda c, i: (c, 0, 0)),
                ),
                compiler_params=pltpu.CompilerParams(
                    dimension_semantics=("parallel", "arbitrary"),
                    vmem_limit_bytes=cfg["vmem_limit"],
                ),
            )(yp2, yt2)
            total = jnp.sum(partials)  # tiny cross-lane reduce in the wrapper
        if tail_loss is not None:
            total = total + jnp.sum(tail_loss)
        if reduction == "mean":
            total = total / n
        return total.astype(out_dtype)

    # reduction == 'none': pure streaming elementwise kernel.
    main_out = None
    if rows > 0:
        br = block_rows if block_rows is not None else cfg["none_rows"]
        if rows <= br:
            tile_rows = rows
        else:
            tile_rows = max(SUBLANE, (br // SUBLANE) * SUBLANE)
        # On multi-TC chips, keep at least num_tc blocks on the parallel axis
        # for mid-sized inputs so megacore sharding has work for every core.
        num_tc = cfg["num_tc"]
        if num_tc > 1 and rows >= 2 * SUBLANE * num_tc:
            cap = _round_up(pl.cdiv(rows, num_tc), SUBLANE)
            tile_rows = min(tile_rows, cap)
        num_tiles = pl.cdiv(rows, tile_rows)

        yp2 = yp[:n_main].reshape(rows, LANE)
        yt2 = yt[:n_main].reshape(rows, LANE)

        main_out = pl.pallas_call(
            _hinge_elementwise_kernel,
            out_shape=jax.ShapeDtypeStruct((rows, LANE), out_dtype),
            grid_spec=pltpu.PrefetchScalarGridSpec(
                num_scalar_prefetch=0,
                grid=(num_tiles,),
                in_specs=[
                    pl.BlockSpec((tile_rows, LANE), lambda i: (i, 0)),
                    pl.BlockSpec((tile_rows, LANE), lambda i: (i, 0)),
                ],
                out_specs=pl.BlockSpec((tile_rows, LANE), lambda i: (i, 0)),
            ),
            compiler_params=pltpu.CompilerParams(
                dimension_semantics=("parallel",),
                vmem_limit_bytes=cfg["vmem_limit"],
            ),
        )(yp2, yt2).reshape(-1)

    if tail_loss is None:
        return main_out if main_out is not None else jnp.zeros((0,), out_dtype)
    tail_out = tail_loss.astype(out_dtype)
    if main_out is None:
        return tail_out
    return jnp.concatenate([main_out, tail_out])


if __name__ == "__main__":
    key = jax.random.PRNGKey(0)
    k1, k2, k3, k4 = jax.random.split(key, 4)

    # Primary: NCHW-like shape, batch=2, channels=4, spatial=16x16 -> 2048 elems.
    shape = (2, 4, 16, 16)
    y_pred = jax.random.normal(k1, shape, dtype=jnp.float32)
    y_true = jnp.where(
        jax.random.bernoulli(k2, 0.5, shape), 1.0, -1.0
    ).astype(jnp.float32)
    ref = jnp.maximum(1.0 - y_true.ravel() * y_pred.ravel(), 0.0)

    out = jax.block_until_ready(hinge_loss(y_pred, y_true, reduction="none"))
    assert out.shape == ref.shape
    assert jnp.allclose(out, ref, atol=1e-6), "none-reduction mismatch"

    m = jax.block_until_ready(hinge_loss(y_pred, y_true, reduction="mean"))
    s = jax.block_until_ready(hinge_loss(y_pred, y_true, reduction="sum"))
    assert jnp.allclose(m, jnp.mean(ref), rtol=1e-5, atol=1e-6), "mean mismatch"
    assert jnp.allclose(s, jnp.sum(ref), rtol=1e-5), "sum mismatch"

    # Secondary: ragged size (not a multiple of 128) with a tiny block so the
    # multi-step grid, straddling-block mask and JAX tail paths are all hit.
    n2 = 4500
    yp_r = jax.random.normal(k3, (n2,), dtype=jnp.float32)
    yt_r = jnp.where(
        jax.random.bernoulli(k4, 0.5, (n2,)), 1.0, -1.0
    ).astype(jnp.float32)
    ref2 = jnp.maximum(1.0 - yt_r * yp_r, 0.0)

    out_r = jax.block_until_ready(
        hinge_loss(yp_r, yt_r, reduction="none", block_rows=8))
    s_r = jax.block_until_ready(
        hinge_loss(yp_r, yt_r, reduction="sum", block_rows=8))
    m_r = jax.block_until_ready(
        hinge_loss(yp_r, yt_r, reduction="mean", block_rows=8))
    assert out_r.shape == ref2.shape
    assert jnp.allclose(out_r, ref2, atol=1e-6), "ragged none mismatch"
    assert jnp.allclose(s_r, jnp.sum(ref2), rtol=1e-5), "ragged sum mismatch"
    assert jnp.allclose(m_r, jnp.mean(ref2), rtol=1e-5, atol=1e-6), "ragged mean mismatch"

    # Tertiary: tiny (<128 elements) input exercises the pure-tail path.
    yp_t, yt_t = yp_r[:100], yt_r[:100]
    ref3 = jnp.maximum(1.0 - yt_t * yp_t, 0.0)
    out_t = jax.block_until_ready(hinge_loss(yp_t, yt_t, reduction="none"))
    s_t = jax.block_until_ready(hinge_loss(yp_t, yt_t, reduction="sum"))
    assert jnp.allclose(out_t, ref3, atol=1e-6), "tiny none mismatch"
    assert jnp.allclose(s_t, jnp.sum(ref3), rtol=1e-5), "tiny sum mismatch"

    print("KERNEL_OK")
</pallas_src>

<mosaic_0001>
module attributes {stable_mosaic.version = 11 : i64} {
  func.func @_hinge_elementwise_kernel(%arg0: i32, %arg1: memref<16x128xf32, #tpu.memory_space<vmem>>, %arg2: memref<16x128xf32, #tpu.memory_space<vmem>>, %arg3: memref<16x128xf32, #tpu.memory_space<vmem>>) attributes {dimension_semantics = [#tpu.dimension_semantics<parallel>], iteration_bounds = array<i64: 1>, scalar_prefetch = 0 : i64, scratch_operands = 0 : i64, tpu.core_type = #tpu.core_type<tc>, window_params = [{transform_indices = @transform_0, window_bounds = array<i64: 16, 128>}, {transform_indices = @transform_1, window_bounds = array<i64: 16, 128>}, {transform_indices = @transform_2, window_bounds = array<i64: 16, 128>}]} {
    %c0 = arith.constant 0 : index
    %c0_0 = arith.constant 0 : index
    %0 = vector.load %arg1[%c0, %c0_0] : memref<16x128xf32, #tpu.memory_space<vmem>>, vector<16x128xf32>
    %c0_1 = arith.constant 0 : index
    %c0_2 = arith.constant 0 : index
    %1 = vector.load %arg2[%c0_1, %c0_2] : memref<16x128xf32, #tpu.memory_space<vmem>>, vector<16x128xf32>
    %2 = arith.mulf %1, %0 : vector<16x128xf32>
    %cst = arith.constant 1.000000e+00 : f32
    %3 = vector.broadcast %cst : f32 to vector<16x128xf32>
    %4 = arith.subf %3, %2 : vector<16x128xf32>
    %cst_3 = arith.constant 0.000000e+00 : f32
    %5 = vector.broadcast %cst_3 : f32 to vector<16x128xf32>
    %6 = arith.maximumf %4, %5 : vector<16x128xf32>
    %c0_4 = arith.constant 0 : index
    %c0_5 = arith.constant 0 : index
    %7 = vector.load %arg3[%c0_4, %c0_5] : memref<16x128xf32, #tpu.memory_space<vmem>>, vector<16x128xf32>
    tpu.vector_store %arg3[%c0_4, %c0_5], %6 {strides = array<i32>} : memref<16x128xf32, #tpu.memory_space<vmem>>, vector<16x128xf32>,
    return
  }
  func.func @transform_0(%arg0: i32) -> (i32, i32) {
    %c0_i32 = arith.constant 0 : i32
    %c0_i32_0 = arith.constant 0 : i32
    return %arg0, %c0_i32 : i32, i32
  }
  func.func @transform_1(%arg0: i32) -> (i32, i32) {
    %c0_i32 = arith.constant 0 : i32
    %c0_i32_0 = arith.constant 0 : i32
    return %arg0, %c0_i32 : i32, i32
  }
  func.func @transform_2(%arg0: i32) -> (i32, i32) {
    %c0_i32 = arith.constant 0 : i32
    %c0_i32_0 = arith.constant 0 : i32
    return %arg0, %c0_i32 : i32, i32
  }
}

</mosaic_0001>

<llo_original>
// kernel: tpu_custom_call.1
$region0: #{tpu_custom_call.1}
  #allocation0 [shape = 'u32[]', space=smem, size = 0x4, offset = 0x4, fixed_abs, tag = 'smem constant byte address 0x4 - core index']
  #allocation1 [shape = 'u32[144,128]{1,0:T(1,128)}', space=vmem, size = 0x12000, scoped, tag = 'internal scratch']
  %s0 = inlined_call_operand.hbm [shape: f32[16,128], index: 0, kind: input, shape index: {}]
  %s1 = inlined_call_operand.hbm [shape: f32[16,128], index: 1, kind: input, shape index: {}]
  %s2 = inlined_call_operand.hbm [shape: f32[16,128], index: 2, kind: output, shape index: {}]
  %s3 = sld [smem:[#allocation0]]
  $region26: #{tpu_custom_call.1} parent=0
    _
  %s5 = ssub.s32 1, %s3
  %s6 = scalar_select 0, %s5, %s3
  $region1: #{tpu_custom_call.1} parent=0
    #allocation2 [shape = 'u8[8192]{0}', space=vmem, size = 0x2000, scoped, tag = 'input window, operand 0, single buffered']
    #allocation3 [shape = 's32[1]{0}', space=sflag, size = 0x4, scoped, tag = 'scoped memory for tpu_custom_call.1']
    #allocation4 [shape = 's32[1]{0}', space=sflag, size = 0x4, scoped, tag = 'scoped memory for tpu_custom_call.1']
    #allocation5 [shape = 'u8[8192]{0}', space=vmem, size = 0x2000, scoped, tag = 'input window, operand 1, single buffered']
    #allocation6 [shape = 's32[1]{0}', space=sflag, size = 0x4, scoped, tag = 'scoped memory for tpu_custom_call.1']
    #allocation7 [shape = 'u8[8192]{0}', space=vmem, size = 0x2000, scoped, tag = 'output window, operand 0, single buffered']
    %7 = vsyncpa [#allocation3], 0
    %8 = vsyncpa [#allocation6], 0
    %9 = vsyncpa [#allocation4], 0
    // Predicated region
    $region2: #{tpu_custom_call.1} parent=1 // pred_check
      _
    $region3: #{tpu_custom_call.1} parent=1 // pred_check_branch
      %11 = sbr.rel (0) target = $region5
    $region4: #{tpu_custom_call.1} parent=1 // pred_region
      %s13 = ssub.s32 256, 256
      %14 = vsyncadd [#allocation3], %s13
      %s15 = sshll.u32 [#allocation2], 4
      %s16 = int_to_ptr.vmem [resolvable:$true] %s15
      %21 = dma.hbm_to_vmem [thread:$0]  %s0, 256, %s16, [#allocation3], 128, 128, 8
    $region5: #{tpu_custom_call.1} parent=1 // pred_fallthru
      _
    // Predicated region
    $region6: #{tpu_custom_call.1} parent=1 // pred_check
      _
    $region7: #{tpu_custom_call.1} parent=1 // pred_check_branch
      %23 = sbr.rel (0) target = $region9
    $region8: #{tpu_custom_call.1} parent=1 // pred_region
      %s25 = ssub.s32 256, 256
      %26 = vsyncadd [#allocation6], %s25
      %s27 = sshll.u32 [#allocation5], 4
      %s28 = int_to_ptr.vmem [resolvable:$true] %s27
      %33 = dma.hbm_to_vmem [thread:$0]  %s1, 256, %s28, [#allocation6], 128, 128, 8
    $region9: #{tpu_custom_call.1} parent=1 // pred_fallthru
      _
    // Predicated region
    $region10: #{tpu_custom_call.1} parent=1 // pred_check
      _
    $region11: #{tpu_custom_call.1} parent=1 // pred_check_branch
      %35 = sbr.rel (0) target = $region13
    $region12: #{tpu_custom_call.1} parent=1 // pred_region
      %36 = dma.done [#allocation3], 256
    $region13: #{tpu_custom_call.1} parent=1 // pred_fallthru
      _
    // Predicated region
    $region14: #{tpu_custom_call.1} parent=1 // pred_check
      _
    $region15: #{tpu_custom_call.1} parent=1 // pred_check_branch
      %38 = sbr.rel (0) target = $region17
    $region16: #{tpu_custom_call.1} parent=1 // pred_region
      %39 = dma.done [#allocation6], 256
    $region17: #{tpu_custom_call.1} parent=1 // pred_fallthru
      _
    %v40 = vld [vmem:[#allocation2] sm:$0xff]
    %v41 = vld [vmem:[#allocation2 + $0x8] sm:$0xff]
    %v42 = vld [vmem:[#allocation5] sm:$0xff]
    %v43 = vld [vmem:[#allocation5 + $0x8] sm:$0xff]
    %v44 = vmul.f32 %v42, %v40
    %v45 = vmul.f32 %v43, %v41
    %v46 = vsub.f32 1.0, %v44
    %v47 = vsub.f32 1.0, %v45
    %v48 = vmax.f32 %v46, 0.0
    %v49 = vmax.f32 %v47, 0.0
    %50 = vst [vmem:[#allocation7] sm:$0xff] %v48
    %51 = vst [vmem:[#allocation7 + $0x8] sm:$0xff] %v49
    // Predicated region
    $region18: #{tpu_custom_call.1} parent=1 // pred_check
      _
    $region19: #{tpu_custom_call.1} parent=1 // pred_check_branch
      %53 = sbr.rel (0) target = $region21
    $region20: #{tpu_custom_call.1} parent=1 // pred_region
      %s55 = ssub.s32 256, 256
      %56 = vsyncadd [#allocation4], %s55
      %s57 = sshll.u32 [#allocation7], 4
      %s58 = int_to_ptr.vmem [resolvable:$true] %s57
      %63 = dma.vmem_to_hbm [thread:$0]  %s58, 256, %s2, [#allocation4], 128, 128, 8
    $region21: #{tpu_custom_call.1} parent=1 // pred_fallthru
      _
    // Predicated region
    $region22: #{tpu_custom_call.1} parent=1 // pred_check
      _
    $region23: #{tpu_custom_call.1} parent=1 // pred_check_branch
      %65 = sbr.rel (0) target = $region25
    $region24: #{tpu_custom_call.1} parent=1 // pred_region
      %66 = dma.done [#allocation4], 256
    $region25: #{tpu_custom_call.1} parent=1 // pred_fallthru
      _
    %67 = vsyncpa [#allocation3], 1
    %68 = vsyncpa [#allocation6], 1
    %69 = vsyncpa [#allocation4], 1

</llo_original>
